<compile_context>
chip_gen: v7x
topology: tpu7x:2x2x1
jax: 0.10.0
libtpu: 0.0.40
codegen_flags: <defaults>
</compile_context>

<pallas_src>
import functools

import jax
import jax.numpy as jnp
from jax import lax
from jax.experimental import pallas as pl
from jax.experimental.pallas import tpu as pltpu


# Input features (3) / flat features (4) plus a constant-1 bias column are
# padded to KIN columns so every packed-weight row block starts on a bf16
# sublane tile (16 rows).
KIN = 16


def _lstm_kernel(xs_ref, w_ref, wout_ref, out_ref, xw_ref,
                 *, batch_pad, length, kin, hidden_pad):
    """Fused LSTM recurrence + output Linear.

    xs_ref:   (L*BP + BP, KIN) f32. rows [0, L*BP): time-major x1s (batch padded
              to BP, feature padded, col KIN-1 == 1 to fold the LSTM bias);
              rows [L*BP, L*BP+BP): x2 with the same augmentation.
    w_ref:    (KIN + 2*HP, 4*HP) bf16. rows [0, KIN): W_ih with the combined
              LSTM bias in row KIN-1; rows [KIN, KIN+HP): W_hh (h-unit padded);
              rows [KIN+HP, KIN+2*HP): zeros (hit by the replicated state half).
              Gate order along lanes is [i | g | f | o], each gate padded to HP.
    wout_ref: (2*HP + KIN, O) bf16. rows [0, 2*HP): W_out[:, :H] padded;
              rows [2*HP, 2*HP+KIN): W_out[:, H:] with the bias in the last row.
    out_ref:  (BP, O) f32.
    xw_ref:   (L*BP, 4*HP) f32 VMEM scratch for the hoisted input projection.
    """
    BP, HP = batch_pad, hidden_pad
    G2, H4 = 2 * hidden_pad, 4 * hidden_pad
    LBP = length * BP

    # --- input projection for ALL timesteps in one MXU matmul (bias folded) ---
    x1 = xs_ref[0:LBP, :].astype(jnp.bfloat16)             # (L*BP, KIN)
    wih = w_ref[0:kin, :]                                   # (KIN, 4*HP) bf16
    xw_ref[...] = jnp.dot(x1, wih, preferred_element_type=jnp.float32)

    whh = w_ref[kin:kin + G2, :]                            # (2*HP, 4*HP) bf16

    # --- loop-invariant lane constants (hoisted, not re-broadcast per step) ---
    lane4 = lax.broadcasted_iota(jnp.int32, (BP, H4), 1)
    is_g = (lane4 >= HP) & (lane4 < G2)                     # tanh-gate lanes
    a_mul = jnp.where(is_g, 1.0, 0.5).astype(jnp.float32)   # pre/post scale
    a_add = 1.0 - a_mul                                     # +0.5 on sigmoid lanes
    m_lo = lax.broadcasted_iota(jnp.int32, (BP, G2), 1) < HP

    # --- recurrence; state is lane-replicated: c2 = [c|c], h2 = [h|h] ---------
    c2 = jnp.zeros((BP, G2), jnp.float32)
    h2 = jnp.zeros((BP, G2), jnp.float32)

    for t in range(length):                                 # static -> unrolled
        z = xw_ref[t * BP:(t + 1) * BP, :]                  # (BP, 4*HP) f32
        if t > 0:                                           # h == 0 at t == 0
            z = z + jnp.dot(h2.astype(jnp.bfloat16), whh,
                            preferred_element_type=jnp.float32)
        # Fused nonlinearity: sigmoid(x)=0.5*tanh(0.5x)+0.5 on i/f/o lanes,
        # tanh(x) on g lanes -> a single EUP pass over the whole gate tile.
        act = jnp.tanh(z * a_mul) * a_mul + a_add           # [si | tg | sf | so]
        lo = act[:, 0:G2]                                   # [si | tg]  aligned
        hi = act[:, G2:H4]                                  # [sf | so]  aligned
        lo_r = pltpu.roll(lo, HP, 1)                        # [tg | si]  half-rot
        hi_r = pltpu.roll(hi, HP, 1)                        # [so | sf]  half-rot
        ig = lo * lo_r                                      # [i*g | i*g]
        f2 = jnp.where(m_lo, hi, hi_r)                      # [f | f]
        o2 = jnp.where(m_lo, hi_r, hi)                      # [o | o]
        c2 = f2 * c2 + ig                                   # [c | c]
        h2 = o2 * jnp.tanh(c2)                              # [h | h]

    # --- output Linear over concat([h, x2]); bias folded via ones column ------
    x2 = xs_ref[LBP:LBP + BP, :].astype(jnp.bfloat16)       # (BP, KIN)
    wo_h = wout_ref[0:G2, :]                                # (2*HP, O) bf16
    wo_x = wout_ref[G2:G2 + kin, :]                         # (KIN, O) bf16
    out_ref[...] = (
        jnp.dot(h2.astype(jnp.bfloat16), wo_h, preferred_element_type=jnp.float32)
        + jnp.dot(x2, wo_x, preferred_element_type=jnp.float32))


def prepare_params(params, *, hidden_pad=64):
    """One-time packing of the LSTM/Linear weights into two kernel buffers.

    hidden_pad (HP) is the per-gate lane stride: 64 makes the recurrent RHS
    256 lanes wide (one push on the 256-wide v6e/v7x MXU, two 128-wide passes
    on v5e).  Must be a multiple of 64 and >= hidden_size.
    """
    H = params["whh"].shape[0]
    F = params["wih"].shape[0]
    Fx = params["wout_x"].shape[0]
    O = params["bout"].shape[-1]
    HP = hidden_pad
    assert HP % 64 == 0 and HP >= H
    assert F < KIN and Fx < KIN                 # room for the constant-1 column

    def pad_reorder_gates(w):       # (K, 4H) -> (K, 4*HP), gate order [i,g,f,o]
        K = w.shape[0]
        w4 = w.reshape(K, 4, H)[:, (0, 2, 1, 3), :]
        return jnp.pad(w4, ((0, 0), (0, 0), (0, HP - H))).reshape(K, 4 * HP)

    wih_g = pad_reorder_gates(params["wih"])    # (F, 4*HP)
    whh_g = pad_reorder_gates(params["whh"])    # (H, 4*HP)
    b_g = pad_reorder_gates(params["b"])        # (1, 4*HP)

    w_lstm = jnp.zeros((KIN + 2 * HP, 4 * HP), jnp.float32)
    w_lstm = w_lstm.at[:F, :].set(wih_g)
    w_lstm = w_lstm.at[KIN - 1, :].set(b_g[0])         # bias row (ones column)
    w_lstm = w_lstm.at[KIN:KIN + H, :].set(whh_g)      # rows KIN+H.. stay zero

    w_out = jnp.zeros((2 * HP + KIN, O), jnp.float32)
    w_out = w_out.at[:H, :].set(params["wout_h"])
    w_out = w_out.at[2 * HP:2 * HP + Fx, :].set(params["wout_x"])
    w_out = w_out.at[2 * HP + KIN - 1, :].set(params["bout"][0])

    return {"w_lstm": w_lstm.astype(jnp.bfloat16),
            "w_out": w_out.astype(jnp.bfloat16)}


@functools.partial(jax.jit, static_argnames=("length",))
def lstm_forward(x1s, x2, packed, *, length):
    """x1s: (B, T, F) batch-first; x2: (B, Fx); length: static python int."""
    B, T, F = x1s.shape
    Fx = x2.shape[1]
    w_lstm, w_out = packed["w_lstm"], packed["w_out"]
    HP = w_lstm.shape[1] // 4
    O = w_out.shape[1]
    assert w_lstm.shape[0] == KIN + 2 * HP and w_out.shape[0] == 2 * HP + KIN
    assert 0 < length <= T

    BP = ((B + 7) // 8) * 8                  # batch padded to one sublane tile
    LBP = length * BP

    # Time-major first `length` steps, batch/feature padded, constant-1 column
    # in position KIN-1 folding the LSTM bias into W_ih (and Linear bias below).
    x1 = jnp.transpose(x1s[:, :length, :], (1, 0, 2)).astype(jnp.float32)
    x1 = jnp.pad(x1, ((0, 0), (0, BP - B), (0, KIN - F)))
    x1 = x1.reshape(LBP, KIN).at[:, KIN - 1].set(1.0)
    x2p = jnp.pad(x2.astype(jnp.float32), ((0, BP - B), (0, KIN - Fx)))
    x2p = x2p.at[:, KIN - 1].set(1.0)
    xs = jnp.concatenate([x1, x2p], axis=0)             # (L*BP + BP, KIN)

    kernel = functools.partial(_lstm_kernel, batch_pad=BP, length=length,
                               kin=KIN, hidden_pad=HP)
    vmem = pl.BlockSpec(memory_space=pltpu.MemorySpace.VMEM)

    out = pl.pallas_call(
        kernel,
        out_shape=jax.ShapeDtypeStruct((BP, O), jnp.float32),
        in_specs=[vmem, vmem, vmem],
        out_specs=vmem,
        scratch_shapes=[pltpu.VMEM((LBP, 4 * HP), jnp.float32)],
    )(xs, w_lstm, w_out)

    return out[:B]


def lstm_reference(x1s, x2, length, params):
    """Pure-JAX f32 reference identical in math to the PyTorch module."""
    B, T, F = x1s.shape
    H = params["whh"].shape[0]

    def step(carry, x_t):
        h, c = carry
        gates = x_t @ params["wih"] + h @ params["whh"] + params["b"]
        i_g = 1.0 / (1.0 + jnp.exp(-gates[:, 0 * H:1 * H]))
        f_g = 1.0 / (1.0 + jnp.exp(-gates[:, 1 * H:2 * H]))
        g_g = jnp.tanh(gates[:, 2 * H:3 * H])
        o_g = 1.0 / (1.0 + jnp.exp(-gates[:, 3 * H:4 * H]))
        c = f_g * c + i_g * g_g
        h = o_g * jnp.tanh(c)
        return (h, c), h

    h0 = jnp.zeros((B, H), jnp.float32)
    (_, _), hs = lax.scan(step, (h0, h0), jnp.transpose(x1s, (1, 0, 2)))
    h_sel = hs[length - 1]
    return h_sel @ params["wout_h"] + x2 @ params["wout_x"] + params["bout"]


def init_params(key, feature_num=3, hidden_size=10, flat_feature_num=4, output_num=6):
    """Deterministic init mimicking PyTorch default uniform(-1/sqrt(H), 1/sqrt(H))."""
    k = jax.random.split(key, 7)
    H, F, Fx, O = hidden_size, feature_num, flat_feature_num, output_num
    s_lstm = 1.0 / jnp.sqrt(H)
    s_lin = 1.0 / jnp.sqrt(H + Fx)
    # PyTorch stores weight_ih as (4H, F); we keep the transposed (F, 4H) layout.
    wih = jax.random.uniform(k[0], (F, 4 * H), jnp.float32, -s_lstm, s_lstm)
    whh = jax.random.uniform(k[1], (H, 4 * H), jnp.float32, -s_lstm, s_lstm)
    b_ih = jax.random.uniform(k[2], (1, 4 * H), jnp.float32, -s_lstm, s_lstm)
    b_hh = jax.random.uniform(k[3], (1, 4 * H), jnp.float32, -s_lstm, s_lstm)
    w_out = jax.random.uniform(k[4], (H + Fx, O), jnp.float32, -s_lin, s_lin)
    b_out = jax.random.uniform(k[5], (1, O), jnp.float32, -s_lin, s_lin)
    return {
        "wih": wih,
        "whh": whh,
        "b": b_ih + b_hh,          # combined bias, as in the LSTM cell equations
        "wout_h": w_out[:H, :],    # acts on the recurrent part of r_selected
        "wout_x": w_out[H:, :],    # acts on the flat-feature part (x2)
        "bout": b_out,
    }


if __name__ == "__main__":
    key = jax.random.PRNGKey(0)
    kx1, kx2, kp = jax.random.split(key, 3)

    B, T, F, H, Fx, O = 2, 8, 3, 10, 4, 6
    length = 5  # static scalar, same for every batch element (as in the PyTorch loop)

    x1s = jax.random.normal(kx1, (B, T, F), jnp.float32)  # nn.LSTM(batch_first=True)
    x2 = jax.random.normal(kx2, (B, Fx), jnp.float32)
    params = init_params(kp, feature_num=F, hidden_size=H,
                         flat_feature_num=Fx, output_num=O)

    packed = prepare_params(params)          # one-time weight packing (outside jit)

    out = lstm_forward(x1s, x2, packed, length=length)
    out = jax.block_until_ready(out)

    ref = lstm_reference(x1s, x2, length, params)
    assert out.shape == (B, O)
    # bf16 MXU inputs (f32 accumulation) keep the error ~1e-3; 2e-2 is ample.
    assert jnp.allclose(out, ref, atol=2e-2, rtol=2e-2), (out, ref)

    print("KERNEL_OK")
</pallas_src>

<mosaic_0001>
module attributes {stable_mosaic.version = 11 : i64} {
  func.func @_lstm_kernel(%arg0: memref<48x16xf32, #tpu.memory_space<vmem>>, %arg1: memref<144x256xbf16, #tpu.memory_space<vmem>>, %arg2: memref<144x6xbf16, #tpu.memory_space<vmem>>, %arg3: memref<8x6xf32, #tpu.memory_space<vmem>>, %arg4: memref<40x256xf32, #tpu.memory_space<vmem>>) attributes {dimension_semantics = [], scalar_prefetch = 0 : i64, scratch_operands = 1 : i64, tpu.core_type = #tpu.core_type<tc>} {
    %c0 = arith.constant 0 : index
    %c0_0 = arith.constant 0 : index
    %0 = vector.load %arg0[%c0, %c0_0] : memref<48x16xf32, #tpu.memory_space<vmem>>, vector<40x16xf32>
    %1 = arith.truncf %0 : vector<40x16xf32> to vector<40x16xbf16>
    %c0_1 = arith.constant 0 : index
    %c0_2 = arith.constant 0 : index
    %2 = vector.load %arg1[%c0_1, %c0_2] : memref<144x256xbf16, #tpu.memory_space<vmem>>, vector<16x256xbf16>
    %cst = arith.constant dense<0.000000e+00> : vector<40x256xf32>
    %3 = tpu.matmul %1, %2, %cst {dimension_numbers = #tpu.dot_dimension_numbers<[1], [0], [0], [1], [0, 0, 1, 1], [], []>} : vector<40x16xbf16>, vector<16x256xbf16>, vector<40x256xf32> -> vector<40x256xf32>
    %c0_3 = arith.constant 0 : index
    %c0_4 = arith.constant 0 : index
    %4 = vector.load %arg4[%c0_3, %c0_4] : memref<40x256xf32, #tpu.memory_space<vmem>>, vector<40x256xf32>
    tpu.vector_store %arg4[%c0_3, %c0_4], %3 {strides = array<i32>} : memref<40x256xf32, #tpu.memory_space<vmem>>, vector<40x256xf32>,
    %c16 = arith.constant 16 : index
    %c0_5 = arith.constant 0 : index
    %5 = vector.load %arg1[%c16, %c0_5] : memref<144x256xbf16, #tpu.memory_space<vmem>>, vector<128x256xbf16>
    %6 = tpu.iota {dimensions = array<i32: 1>} : vector<8x256xi32>
    %c64_i32 = arith.constant 64 : i32
    %7 = vector.broadcast %c64_i32 : i32 to vector<8x256xi32>
    %8 = arith.cmpi sge, %6, %7 : vector<8x256xi32>
    %c128_i32 = arith.constant 128 : i32
    %9 = vector.broadcast %c128_i32 : i32 to vector<8x256xi32>
    %10 = arith.cmpi slt, %6, %9 : vector<8x256xi32>
    %11 = arith.andi %8, %10 : vector<8x256xi1>
    %cst_6 = arith.constant 1.000000e+00 : f32
    %cst_7 = arith.constant 5.000000e-01 : f32
    %12 = vector.broadcast %cst_6 : f32 to vector<8x256xf32>
    %13 = vector.broadcast %cst_7 : f32 to vector<8x256xf32>
    %14 = arith.select %11, %12, %13 : vector<8x256xi1>, vector<8x256xf32>
    %cst_8 = arith.constant 1.000000e+00 : f32
    %15 = vector.broadcast %cst_8 : f32 to vector<8x256xf32>
    %16 = arith.subf %15, %14 : vector<8x256xf32>
    %17 = tpu.iota {dimensions = array<i32: 1>} : vector<8x128xi32>
    %c64_i32_9 = arith.constant 64 : i32
    %18 = vector.broadcast %c64_i32_9 : i32 to vector<8x128xi32>
    %19 = arith.cmpi slt, %17, %18 : vector<8x128xi32>
    %cst_10 = arith.constant 0.000000e+00 : f32
    %20 = vector.broadcast %cst_10 : f32 to vector<8x128xf32>
    %c0_11 = arith.constant 0 : index
    %c0_12 = arith.constant 0 : index
    %21 = vector.load %arg4[%c0_11, %c0_12] : memref<40x256xf32, #tpu.memory_space<vmem>>, vector<8x256xf32>
    %22 = arith.mulf %21, %14 : vector<8x256xf32>
    %23 = math.tanh %22 : vector<8x256xf32>
    %24 = arith.mulf %23, %14 : vector<8x256xf32>
    %25 = arith.addf %24, %16 : vector<8x256xf32>
    %26 = vector.extract_strided_slice %25 {offsets = [0, 0], sizes = [8, 128], strides = [1, 1]} : vector<8x256xf32> to vector<8x128xf32>
    %27 = vector.extract_strided_slice %25 {offsets = [0, 128], sizes = [8, 128], strides = [1, 1]} : vector<8x256xf32> to vector<8x128xf32>
    %c64_i32_13 = arith.constant 64 : i32
    %28 = tpu.dynamic_rotate %26 by %c64_i32_13 dim 1 : vector<8x128xf32>, i32 -> vector<8x128xf32>
    %c64_i32_14 = arith.constant 64 : i32
    %29 = tpu.dynamic_rotate %27 by %c64_i32_14 dim 1 : vector<8x128xf32>, i32 -> vector<8x128xf32>
    %30 = arith.mulf %26, %28 : vector<8x128xf32>
    %31 = arith.select %19, %27, %29 : vector<8x128xi1>, vector<8x128xf32>
    %32 = arith.select %19, %29, %27 : vector<8x128xi1>, vector<8x128xf32>
    %33 = arith.mulf %31, %20 : vector<8x128xf32>
    %34 = arith.addf %33, %30 : vector<8x128xf32>
    %35 = math.tanh %34 : vector<8x128xf32>
    %36 = arith.mulf %32, %35 : vector<8x128xf32>
    %c8 = arith.constant 8 : index
    %c0_15 = arith.constant 0 : index
    %37 = vector.load %arg4[%c8, %c0_15] : memref<40x256xf32, #tpu.memory_space<vmem>>, vector<8x256xf32>
    %38 = arith.truncf %36 : vector<8x128xf32> to vector<8x128xbf16>
    %cst_16 = arith.constant dense<0.000000e+00> : vector<8x256xf32>
    %39 = tpu.matmul %38, %5, %cst_16 {dimension_numbers = #tpu.dot_dimension_numbers<[1], [0], [0], [1], [0, 0, 1, 1], [], []>} : vector<8x128xbf16>, vector<128x256xbf16>, vector<8x256xf32> -> vector<8x256xf32>
    %40 = arith.addf %37, %39 : vector<8x256xf32>
    %41 = arith.mulf %40, %14 : vector<8x256xf32>
    %42 = math.tanh %41 : vector<8x256xf32>
    %43 = arith.mulf %42, %14 : vector<8x256xf32>
    %44 = arith.addf %43, %16 : vector<8x256xf32>
    %45 = vector.extract_strided_slice %44 {offsets = [0, 0], sizes = [8, 128], strides = [1, 1]} : vector<8x256xf32> to vector<8x128xf32>
    %46 = vector.extract_strided_slice %44 {offsets = [0, 128], sizes = [8, 128], strides = [1, 1]} : vector<8x256xf32> to vector<8x128xf32>
    %c64_i32_17 = arith.constant 64 : i32
    %47 = tpu.dynamic_rotate %45 by %c64_i32_17 dim 1 : vector<8x128xf32>, i32 -> vector<8x128xf32>
    %c64_i32_18 = arith.constant 64 : i32
    %48 = tpu.dynamic_rotate %46 by %c64_i32_18 dim 1 : vector<8x128xf32>, i32 -> vector<8x128xf32>
    %49 = arith.mulf %45, %47 : vector<8x128xf32>
    %50 = arith.select %19, %46, %48 : vector<8x128xi1>, vector<8x128xf32>
    %51 = arith.select %19, %48, %46 : vector<8x128xi1>, vector<8x128xf32>
    %52 = arith.mulf %50, %34 : vector<8x128xf32>
    %53 = arith.addf %52, %49 : vector<8x128xf32>
    %54 = math.tanh %53 : vector<8x128xf32>
    %55 = arith.mulf %51, %54 : vector<8x128xf32>
    %c16_19 = arith.constant 16 : index
    %c0_20 = arith.constant 0 : index
    %56 = vector.load %arg4[%c16_19, %c0_20] : memref<40x256xf32, #tpu.memory_space<vmem>>, vector<8x256xf32>
    %57 = arith.truncf %55 : vector<8x128xf32> to vector<8x128xbf16>
    %cst_21 = arith.constant dense<0.000000e+00> : vector<8x256xf32>
    %58 = tpu.matmul %57, %5, %cst_21 {dimension_numbers = #tpu.dot_dimension_numbers<[1], [0], [0], [1], [0, 0, 1, 1], [], []>} : vector<8x128xbf16>, vector<128x256xbf16>, vector<8x256xf32> -> vector<8x256xf32>
    %59 = arith.addf %56, %58 : vector<8x256xf32>
    %60 = arith.mulf %59, %14 : vector<8x256xf32>
    %61 = math.tanh %60 : vector<8x256xf32>
    %62 = arith.mulf %61, %14 : vector<8x256xf32>
    %63 = arith.addf %62, %16 : vector<8x256xf32>
    %64 = vector.extract_strided_slice %63 {offsets = [0, 0], sizes = [8, 128], strides = [1, 1]} : vector<8x256xf32> to vector<8x128xf32>
    %65 = vector.extract_strided_slice %63 {offsets = [0, 128], sizes = [8, 128], strides = [1, 1]} : vector<8x256xf32> to vector<8x128xf32>
    %c64_i32_22 = arith.constant 64 : i32
    %66 = tpu.dynamic_rotate %64 by %c64_i32_22 dim 1 : vector<8x128xf32>, i32 -> vector<8x128xf32>
    %c64_i32_23 = arith.constant 64 : i32
    %67 = tpu.dynamic_rotate %65 by %c64_i32_23 dim 1 : vector<8x128xf32>, i32 -> vector<8x128xf32>
    %68 = arith.mulf %64, %66 : vector<8x128xf32>
    %69 = arith.select %19, %65, %67 : vector<8x128xi1>, vector<8x128xf32>
    %70 = arith.select %19, %67, %65 : vector<8x128xi1>, vector<8x128xf32>
    %71 = arith.mulf %69, %53 : vector<8x128xf32>
    %72 = arith.addf %71, %68 : vector<8x128xf32>
    %73 = math.tanh %72 : vector<8x128xf32>
    %74 = arith.mulf %70, %73 : vector<8x128xf32>
    %c24 = arith.constant 24 : index
    %c0_24 = arith.constant 0 : index
    %75 = vector.load %arg4[%c24, %c0_24] : memref<40x256xf32, #tpu.memory_space<vmem>>, vector<8x256xf32>
    %76 = arith.truncf %74 : vector<8x128xf32> to vector<8x128xbf16>
    %cst_25 = arith.constant dense<0.000000e+00> : vector<8x256xf32>
    %77 = tpu.matmul %76, %5, %cst_25 {dimension_numbers = #tpu.dot_dimension_numbers<[1], [0], [0], [1], [0, 0, 1, 1], [], []>} : vector<8x128xbf16>, vector<128x256xbf16>, vector<8x256xf32> -> vector<8x256xf32>
    %78 = arith.addf %75, %77 : vector<8x256xf32>
    %79 = arith.mulf %78, %14 : vector<8x256xf32>
    %80 = math.tanh %79 : vector<8x256xf32>
    %81 = arith.mulf %80, %14 : vector<8x256xf32>
    %82 = arith.addf %81, %16 : vector<8x256xf32>
    %83 = vector.extract_strided_slice %82 {offsets = [0, 0], sizes = [8, 128], strides = [1, 1]} : vector<8x256xf32> to vector<8x128xf32>
    %84 = vector.extract_strided_slice %82 {offsets = [0, 128], sizes = [8, 128], strides = [1, 1]} : vector<8x256xf32> to vector<8x128xf32>
    %c64_i32_26 = arith.constant 64 : i32
    %85 = tpu.dynamic_rotate %83 by %c64_i32_26 dim 1 : vector<8x128xf32>, i32 -> vector<8x128xf32>
    %c64_i32_27 = arith.constant 64 : i32
    %86 = tpu.dynamic_rotate %84 by %c64_i32_27 dim 1 : vector<8x128xf32>, i32 -> vector<8x128xf32>
    %87 = arith.mulf %83, %85 : vector<8x128xf32>
    %88 = arith.select %19, %84, %86 : vector<8x128xi1>, vector<8x128xf32>
    %89 = arith.select %19, %86, %84 : vector<8x128xi1>, vector<8x128xf32>
    %90 = arith.mulf %88, %72 : vector<8x128xf32>
    %91 = arith.addf %90, %87 : vector<8x128xf32>
    %92 = math.tanh %91 : vector<8x128xf32>
    %93 = arith.mulf %89, %92 : vector<8x128xf32>
    %c32 = arith.constant 32 : index
    %c0_28 = arith.constant 0 : index
    %94 = vector.load %arg4[%c32, %c0_28] : memref<40x256xf32, #tpu.memory_space<vmem>>, vector<8x256xf32>
    %95 = arith.truncf %93 : vector<8x128xf32> to vector<8x128xbf16>
    %cst_29 = arith.constant dense<0.000000e+00> : vector<8x256xf32>
    %96 = tpu.matmul %95, %5, %cst_29 {dimension_numbers = #tpu.dot_dimension_numbers<[1], [0], [0], [1], [0, 0, 1, 1], [], []>} : vector<8x128xbf16>, vector<128x256xbf16>, vector<8x256xf32> -> vector<8x256xf32>
    %97 = arith.addf %94, %96 : vector<8x256xf32>
    %98 = arith.mulf %97, %14 : vector<8x256xf32>
    %99 = math.tanh %98 : vector<8x256xf32>
    %100 = arith.mulf %99, %14 : vector<8x256xf32>
    %101 = arith.addf %100, %16 : vector<8x256xf32>
    %102 = vector.extract_strided_slice %101 {offsets = [0, 0], sizes = [8, 128], strides = [1, 1]} : vector<8x256xf32> to vector<8x128xf32>
    %103 = vector.extract_strided_slice %101 {offsets = [0, 128], sizes = [8, 128], strides = [1, 1]} : vector<8x256xf32> to vector<8x128xf32>
    %c64_i32_30 = arith.constant 64 : i32
    %104 = tpu.dynamic_rotate %102 by %c64_i32_30 dim 1 : vector<8x128xf32>, i32 -> vector<8x128xf32>
    %c64_i32_31 = arith.constant 64 : i32
    %105 = tpu.dynamic_rotate %103 by %c64_i32_31 dim 1 : vector<8x128xf32>, i32 -> vector<8x128xf32>
    %106 = arith.mulf %102, %104 : vector<8x128xf32>
    %107 = arith.select %19, %103, %105 : vector<8x128xi1>, vector<8x128xf32>
    %108 = arith.select %19, %105, %103 : vector<8x128xi1>, vector<8x128xf32>
    %109 = arith.mulf %107, %91 : vector<8x128xf32>
    %110 = arith.addf %109, %106 : vector<8x128xf32>
    %111 = math.tanh %110 : vector<8x128xf32>
    %112 = arith.mulf %108, %111 : vector<8x128xf32>
    %c40 = arith.constant 40 : index
    %c0_32 = arith.constant 0 : index
    %113 = vector.load %arg0[%c40, %c0_32] : memref<48x16xf32, #tpu.memory_space<vmem>>, vector<8x16xf32>
    %114 = arith.truncf %113 : vector<8x16xf32> to vector<8x16xbf16>
    %c0_33 = arith.constant 0 : index
    %c0_34 = arith.constant 0 : index
    %115 = vector.load %arg2[%c0_33, %c0_34] : memref<144x6xbf16, #tpu.memory_space<vmem>>, vector<128x6xbf16>
    %c128 = arith.constant 128 : index
    %c0_35 = arith.constant 0 : index
    %116 = vector.load %arg2[%c128, %c0_35] : memref<144x6xbf16, #tpu.memory_space<vmem>>, vector<16x6xbf16>
    %117 = arith.truncf %112 : vector<8x128xf32> to vector<8x128xbf16>
    %cst_36 = arith.constant dense<0.000000e+00> : vector<8x6xf32>
    %118 = tpu.matmul %117, %115, %cst_36 {dimension_numbers = #tpu.dot_dimension_numbers<[1], [0], [0], [1], [0, 0, 1, 1], [], []>} : vector<8x128xbf16>, vector<128x6xbf16>, vector<8x6xf32> -> vector<8x6xf32>
    %cst_37 = arith.constant dense<0.000000e+00> : vector<8x6xf32>
    %119 = tpu.matmul %114, %116, %cst_37 {dimension_numbers = #tpu.dot_dimension_numbers<[1], [0], [0], [1], [0, 0, 1, 1], [], []>} : vector<8x16xbf16>, vector<16x6xbf16>, vector<8x6xf32> -> vector<8x6xf32>
    %120 = arith.addf %118, %119 : vector<8x6xf32>
    %c0_38 = arith.constant 0 : index
    %c0_39 = arith.constant 0 : index
    %121 = vector.load %arg3[%c0_38, %c0_39] : memref<8x6xf32, #tpu.memory_space<vmem>>, vector<8x6xf32>
    tpu.vector_store %arg3[%c0_38, %c0_39], %120 {strides = array<i32>} : memref<8x6xf32, #tpu.memory_space<vmem>>, vector<8x6xf32>,
    return
  }
}

</mosaic_0001>

<llo_original>
// kernel: lstm_forward.1
$region0: #{lstm_forward.1}
  #allocation0 [shape = 'u32[]', space=smem, size = 0x4, offset = 0x4, fixed_abs, tag = 'smem constant byte address 0x4 - core index']
  #allocation1 [shape = 'u32[144,128]{1,0:T(1,128)}', space=vmem, size = 0x12000, scoped, tag = 'internal scratch']
  #allocation2 [shape = 'f32[40,256]{1,0:T(8,128)}', space=vmem, size = 0xa000, scoped, tag = 'scratch operand']
  %s0 = inlined_call_operand.vmem [shape: f32[48,16], index: 0, kind: input, shape index: {}]
  %s1 = inlined_call_operand.vmem [shape: bf16[144,256], index: 1, kind: input, shape index: {}]
  %s2 = inlined_call_operand.vmem [shape: bf16[144,6], index: 2, kind: input, shape index: {}]
  %s3 = inlined_call_operand.vmem [shape: f32[8,6], index: 3, kind: output, shape index: {}]
  %s4 = sld [smem:[#allocation0]]
  $region22: #{lstm_forward.1} parent=0
    _
  %s6 = ssub.s32 1, %s4
  %s7 = scalar_select 0, %s6, %s4
  // Predicated region
  $region2: #{lstm_forward.1} parent=0 // pred_check
    _
  $region3: #{lstm_forward.1} parent=0 // pred_check_branch
    %9 = sbr.rel (0) target = $region5
  $region4: #{lstm_forward.1} parent=0 // pred_region
    _
  $region5: #{lstm_forward.1} parent=0 // pred_fallthru
    _
  // Predicated region
  $region6: #{lstm_forward.1} parent=0 // pred_check
    _
  $region7: #{lstm_forward.1} parent=0 // pred_check_branch
    %11 = sbr.rel (0) target = $region9
  $region8: #{lstm_forward.1} parent=0 // pred_region
    _
  $region9: #{lstm_forward.1} parent=0 // pred_fallthru
    _
  // Predicated region
  $region10: #{lstm_forward.1} parent=0 // pred_check
    _
  $region11: #{lstm_forward.1} parent=0 // pred_check_branch
    %13 = sbr.rel (0) target = $region13
  $region12: #{lstm_forward.1} parent=0 // pred_region
    _
  $region13: #{lstm_forward.1} parent=0 // pred_fallthru
    _
  %v15 = vld [vmem:[%s0] sm:$0xff]
  %v16 = vld [vmem:[%s0 + $0x8] sm:$0xff]
  %v17 = vld [vmem:[%s0 + $0x10] sm:$0xff]
  %v18 = vld [vmem:[%s0 + $0x18] sm:$0xff]
  %v19 = vld [vmem:[%s0 + $0x20] sm:$0xff]
  %v20 = vpack.c.bf16 %v16, %v15
  %v21 = vpack.c.bf16 %v18, %v17
  %v22 = vpack.c.bf16 %v19, %v19
  %v23 = vld [vmem:[%s1] sm:$0xff]
  %v24 = vld [vmem:[%s1 + $0x8] sm:$0xff]
  %v27 = vunpack.c.l.b16 %v23
  %v28 = vunpack.c.h.b16 %v23
  %v29 = vunpack.c.l.b16 %v24
  %v30 = vunpack.c.h.b16 %v24
  %v31 = vpack.c.b16 %v29, %v27
  %v32 = vpack.c.b16 %v30, %v28
  %vm35 = vcmask 130048
  %v37 = vsel %vm35, %v20, 0
  %v40 = vsel %vm35, %v21, 0
  %v43 = vsel %vm35, %v22, 0
  %45 = vmatprep.subr.bf16.mxu0 %v32
  %46 = vmatpush1.bf16.msra.mxu0 %v31
  %47 = vmatprep.subr.bf16.mxu0 0
  %48 = vmatpush1.bf16.msra.mxu0 0
  %49 = vmatprep.subr.bf16.mxu0 0
  %50 = vmatpush1.bf16.msra.mxu0 0
  %51 = vmatprep.subr.bf16.mxu0 0
  %52 = vmatpush1.bf16.msra.mxu0 0
  %53 = vmatprep.subr.bf16.mxu0 0
  %54 = vmatpush1.bf16.msra.mxu0 0
  %55 = vmatprep.subr.bf16.mxu0 0
  %56 = vmatpush1.bf16.msra.mxu0 0
  %57 = vmatprep.subr.bf16.mxu0 0
  %58 = vmatpush1.bf16.msra.mxu0 0
  %59 = vmatprep.subr.bf16.mxu0 0
  %60 = vmatpush1.bf16.msra.mxu0 0
  %61 = vmatprep.subr.bf16.mxu0 0
  %62 = vmatpush1.bf16.msra.mxu0 0
  %63 = vmatprep.subr.bf16.mxu0 0
  %64 = vmatpush1.bf16.msra.mxu0 0
  %65 = vmatprep.subr.bf16.mxu0 0
  %66 = vmatpush1.bf16.msra.mxu0 0
  %67 = vmatprep.subr.bf16.mxu0 0
  %68 = vmatpush1.bf16.msra.mxu0 0
  %69 = vmatprep.subr.bf16.mxu0 0
  %70 = vmatpush1.bf16.msra.mxu0 0
  %71 = vmatprep.subr.bf16.mxu0 0
  %72 = vmatpush1.bf16.msra.mxu0 0
  %73 = vmatprep.subr.bf16.mxu0 0
  %74 = vmatpush1.bf16.msra.mxu0 0
  %75 = vmatprep.subr.bf16.mxu0 0
  %76 = vmatpush1.bf16.msra.mxu0 0
  %77 = vmatprep.mubr.bf16.mxu0 0
  %78 = vmatmul.mubr.bf16.gmra.mrb[0].mxu0 %v37
  %v79 = vpop.f32.mrb[0].mxu0
  %v80 = vadd.f32 0.0, %v79
  %v81 = vpop.f32.mrb[0].mxu0
  %v82 = vadd.f32 0.0, %v81
  %v83 = vpop.f32.mrb[0].mxu0
  %v84 = vadd.f32 0.0, %v83
  %v85 = vpop.f32.mrb[0].mxu0
  %v86 = vadd.f32 0.0, %v85
  %87 = vmatprep.mubr.bf16.mxu0 0
  %88 = vmatmul.mubr.bf16.gmra.mrb[0].mxu0 %v40
  %v89 = vpop.f32.mrb[0].mxu0
  %v90 = vadd.f32 0.0, %v89
  %v91 = vpop.f32.mrb[0].mxu0
  %v92 = vadd.f32 0.0, %v91
  %v93 = vpop.f32.mrb[0].mxu0
  %v94 = vadd.f32 0.0, %v93
  %v95 = vpop.f32.mrb[0].mxu0
  %v96 = vadd.f32 0.0, %v95
  %97 = vmatprep.mubr.bf16.mxu0 0
  %98 = vmatmul.mubr.bf16.gmra.mrb[0].mxu0 %v43
  %v99 = vpop.f32.mrb[0].mxu0
  %v100 = vadd.f32 0.0, %v99
  %v101 = vpop.f32.mrb[0].mxu0
  %v102 = vadd.f32 0.0, %v101
  %v103 = vpop.f32.mrb[0].mxu0
  %v104 = vpop.f32.mrb[0].mxu0
  %105 = vdwg.mxu0
  %106 = vst [vmem:[#allocation2] sm:$0xff] %v80
  %107 = vst [vmem:[#allocation2 + $0x8] sm:$0xff] %v82
  %108 = vst [vmem:[#allocation2 + $0x10] sm:$0xff] %v84
  %109 = vst [vmem:[#allocation2 + $0x18] sm:$0xff] %v86
  %110 = vst [vmem:[#allocation2 + $0x20] sm:$0xff] %v90
  %111 = vst [vmem:[#allocation2 + $0x28] sm:$0xff] %v92
  %112 = vst [vmem:[#allocation2 + $0x30] sm:$0xff] %v94
  %113 = vst [vmem:[#allocation2 + $0x38] sm:$0xff] %v96
  %114 = vst [vmem:[#allocation2 + $0x40] sm:$0xff] %v100
  %115 = vst [vmem:[#allocation2 + $0x48] sm:$0xff] %v102
  %v116 = vld [vmem:[%s1 + $0x10] sm:$0xff]
  %v117 = vld [vmem:[%s1 + $0x18] sm:$0xff]
  %v118 = vld [vmem:[%s1 + $0x20] sm:$0xff]
  %v119 = vld [vmem:[%s1 + $0x28] sm:$0xff]
  %v120 = vld [vmem:[%s1 + $0x30] sm:$0xff]
  %v121 = vld [vmem:[%s1 + $0x38] sm:$0xff]
  %v122 = vld [vmem:[%s1 + $0x40] sm:$0xff]
  %v123 = vld [vmem:[%s1 + $0x48] sm:$0xff]
  %v124 = vld [vmem:[%s1 + $0x50] sm:$0xff]
  %v125 = vld [vmem:[%s1 + $0x58] sm:$0xff]
  %v126 = vld [vmem:[%s1 + $0x60] sm:$0xff]
  %v127 = vld [vmem:[%s1 + $0x68] sm:$0xff]
  %v128 = vld [vmem:[%s1 + $0x70] sm:$0xff]
  %v129 = vld [vmem:[%s1 + $0x78] sm:$0xff]
  %v130 = vld [vmem:[%s1 + $0x80] sm:$0xff]
  %v131 = vld [vmem:[%s1 + $0x88] sm:$0xff]
  %v132 = vlaneseq
  %v133 = vand.u32 %v132, 127
  %v134 = vadd.s32 %v133, 128
  %vm135 = vcmp.ge.s32.totalorder %v133, 64
  %vm136 = vcmp.ge.s32.totalorder %v134, 64
  %vm137 = vcmp.lt.s32.totalorder %v133, 128
  %vm138 = vcmp.lt.s32.totalorder %v134, 128
  %vm139 = vmand %vm135, %vm137
  %vm140 = vmand %vm136, %vm138
  %v141 = vsel %vm139, 1.0, 0.5
  %v142 = vsel %vm140, 1.0, 0.5
  %v143 = vsub.f32 1.0, %v141
  %v144 = vsub.f32 1.0, %v142
  %vm145 = vcmp.lt.s32.totalorder %v133, 64
  %v146 = vld [vmem:[#allocation2] sm:$0xff]
  %v147 = vld [vmem:[#allocation2 + $0x8] sm:$0xff]
  %v148 = vmul.f32 %v146, %v141
  %v149 = vmul.f32 %v147, %v142
  %v150 = vtanh.pop %v148
  %v151 = vtanh.pop %v149
  %v152 = vmul.f32 %v150, %v141
  %v153 = vmul.f32 %v151, %v142
  %v154 = vadd.f32 %v152, %v143
  %v155 = vadd.f32 %v153, %v144
  %156 = vrot.lane.b32.xlu0 %v154, 64
  %v157 = vpop.permute.xlu0 %156
  %158 = vrot.lane.b32.xlu0 %v155, 64
  %v159 = vpop.permute.xlu0 %158
  %v160 = vmul.f32 %v154, %v157
  %v161 = vsel %vm145, %v155, %v159
  %v162 = vsel %vm145, %v159, %v155
  %v163 = vmul.f32 %v161, 0.0
  %v164 = vadd.f32 %v163, %v160
  %v165 = vtanh.pop %v164
  %v166 = vmul.f32 %v162, %v165
  %v167 = vld [vmem:[#allocation2 + $0x10] sm:$0xff]
  %v168 = vld [vmem:[#allocation2 + $0x18] sm:$0xff]
  %v169 = vpack.c.bf16 %v166, %v166
  %v186 = vunpack.c.l.b16 %v116
  %v187 = vunpack.c.h.b16 %v116
  %v188 = vunpack.c.l.b16 %v117
  %v189 = vunpack.c.h.b16 %v117
  %v190 = vunpack.c.l.b16 %v118
  %v191 = vunpack.c.h.b16 %v118
  %v192 = vunpack.c.l.b16 %v119
  %v193 = vunpack.c.h.b16 %v119
  %v194 = vunpack.c.l.b16 %v120
  %v195 = vunpack.c.h.b16 %v120
  %v196 = vunpack.c.l.b16 %v121
  %v197 = vunpack.c.h.b16 %v121
  %v198 = vunpack.c.l.b16 %v122
  %v199 = vunpack.c.h.b16 %v122
  %v200 = vunpack.c.l.b16 %v123
  %v201 = vunpack.c.h.b16 %v123
  %v202 = vunpack.c.l.b16 %v124
  %v203 = vunpack.c.h.b16 %v124
  %v204 = vunpack.c.l.b16 %v125
  %v205 = vunpack.c.h.b16 %v125
  %v206 = vunpack.c.l.b16 %v126
  %v207 = vunpack.c.h.b16 %v126
  %v208 = vunpack.c.l.b16 %v127
  %v209 = vunpack.c.h.b16 %v127
  %v210 = vunpack.c.l.b16 %v128
  %v211 = vunpack.c.h.b16 %v128
  %v212 = vunpack.c.l.b16 %v129
  %v213 = vunpack.c.h.b16 %v129
  %v214 = vunpack.c.l.b16 %v130
  %v215 = vunpack.c.h.b16 %v130
  %v216 = vunpack.c.l.b16 %v131
  %v217 = vunpack.c.h.b16 %v131
  %v218 = vpack.c.b16 %v188, %v186
  %v219 = vpack.c.b16 %v189, %v187
  %v220 = vpack.c.b16 %v192, %v190
  %v221 = vpack.c.b16 %v193, %v191
  %v222 = vpack.c.b16 %v196, %v194
  %v223 = vpack.c.b16 %v197, %v195
  %v224 = vpack.c.b16 %v200, %v198
  %v225 = vpack.c.b16 %v201, %v199
  %v226 = vpack.c.b16 %v204, %v202
  %v227 = vpack.c.b16 %v205, %v203
  %v228 = vpack.c.b16 %v208, %v206
  %v229 = vpack.c.b16 %v209, %v207
  %v230 = vpack.c.b16 %v212, %v210
  %v231 = vpack.c.b16 %v213, %v211
  %v232 = vpack.c.b16 %v216, %v214
  %v233 = vpack.c.b16 %v217, %v215
  %250 = vmatprep.subr.bf16.mxu0 %v219
  %251 = vmatpush1.bf16.msra.mxu0 %v218
  %252 = vmatprep.subr.bf16.mxu0 %v221
  %253 = vmatpush1.bf16.msra.mxu0 %v220
  %254 = vmatprep.subr.bf16.mxu0 %v223
  %255 = vmatpush1.bf16.msra.mxu0 %v222
  %256 = vmatprep.subr.bf16.mxu0 %v225
  %257 = vmatpush1.bf16.msra.mxu0 %v224
  %258 = vmatprep.subr.bf16.mxu0 %v227
  %259 = vmatpush1.bf16.msra.mxu0 %v226
  %260 = vmatprep.subr.bf16.mxu0 %v229
  %261 = vmatpush1.bf16.msra.mxu0 %v228
  %262 = vmatprep.subr.bf16.mxu0 %v231
  %263 = vmatpush1.bf16.msra.mxu0 %v230
  %264 = vmatprep.subr.bf16.mxu0 %v233
  %265 = vmatpush1.bf16.msra.mxu0 %v232
  %266 = vmatprep.subr.bf16.mxu0 0
  %267 = vmatpush1.bf16.msra.mxu0 0
  %268 = vmatprep.subr.bf16.mxu0 0
  %269 = vmatpush1.bf16.msra.mxu0 0
  %270 = vmatprep.subr.bf16.mxu0 0
  %271 = vmatpush1.bf16.msra.mxu0 0
  %272 = vmatprep.subr.bf16.mxu0 0
  %273 = vmatpush1.bf16.msra.mxu0 0
  %274 = vmatprep.subr.bf16.mxu0 0
  %275 = vmatpush1.bf16.msra.mxu0 0
  %276 = vmatprep.subr.bf16.mxu0 0
  %277 = vmatpush1.bf16.msra.mxu0 0
  %278 = vmatprep.subr.bf16.mxu0 0
  %279 = vmatpush1.bf16.msra.mxu0 0
  %280 = vmatprep.subr.bf16.mxu0 0
  %281 = vmatpush1.bf16.msra.mxu0 0
  %282 = vmatprep.mubr.bf16.mxu0 0
  %283 = vmatmul.mubr.bf16.gmra.mrb[0].mxu0 %v169
  %v284 = vpop.f32.mrb[0].mxu0
  %v285 = vadd.f32 0.0, %v284
  %v286 = vpop.f32.mrb[0].mxu0
  %v287 = vadd.f32 0.0, %v286
  %v288 = vpop.f32.mrb[0].mxu0
  %v289 = vpop.f32.mrb[0].mxu0
  %290 = vdwg.mxu0
  %v291 = vadd.f32 %v167, %v285
  %v292 = vadd.f32 %v168, %v287
  %v293 = vmul.f32 %v291, %v141
  %v294 = vmul.f32 %v292, %v142
  %v295 = vtanh.pop %v293
  %v296 = vtanh.pop %v294
  %v297 = vmul.f32 %v295, %v141
  %v298 = vmul.f32 %v296, %v142
  %v299 = vadd.f32 %v297, %v143
  %v300 = vadd.f32 %v298, %v144
  %301 = vrot.lane.b32.xlu0 %v299, 64
  %v302 = vpop.permute.xlu0 %301
  %303 = vrot.lane.b32.xlu0 %v300, 64
  %v304 = vpop.permute.xlu0 %303
  %v305 = vmul.f32 %v299, %v302
  %v306 = vsel %vm145, %v300, %v304
  %v307 = vsel %vm145, %v304, %v300
  %v308 = vmul.f32 %v306, %v164
  %v309 = vadd.f32 %v308, %v305
  %v310 = vtanh.pop %v309
  %v311 = vmul.f32 %v307, %v310
  %v312 = vld [vmem:[#allocation2 + $0x20] sm:$0xff]
  %v313 = vld [vmem:[#allocation2 + $0x28] sm:$0xff]
  %v314 = vpack.c.bf16 %v311, %v311
  %315 = vmatprep.subr.bf16.mxu0 %v219
  %316 = vmatpush1.bf16.msra.mxu0 %v218
  %317 = vmatprep.subr.bf16.mxu0 %v221
  %318 = vmatpush1.bf16.msra.mxu0 %v220
  %319 = vmatprep.subr.bf16.mxu0 %v223
  %320 = vmatpush1.bf16.msra.mxu0 %v222
  %321 = vmatprep.subr.bf16.mxu0 %v225
  %322 = vmatpush1.bf16.msra.mxu0 %v224
  %323 = vmatprep.subr.bf16.mxu0 %v227
  %324 = vmatpush1.bf16.msra.mxu0 %v226
  %325 = vmatprep.subr.bf16.mxu0 %v229
  %326 = vmatpush1.bf16.msra.mxu0 %v228
  %327 = vmatprep.subr.bf16.mxu0 %v231
  %328 = vmatpush1.bf16.msra.mxu0 %v230
  %329 = vmatprep.subr.bf16.mxu0 %v233
  %330 = vmatpush1.bf16.msra.mxu0 %v232
  %331 = vmatprep.subr.bf16.mxu0 0
  %332 = vmatpush1.bf16.msra.mxu0 0
  %333 = vmatprep.subr.bf16.mxu0 0
  %334 = vmatpush1.bf16.msra.mxu0 0
  %335 = vmatprep.subr.bf16.mxu0 0
  %336 = vmatpush1.bf16.msra.mxu0 0
  %337 = vmatprep.subr.bf16.mxu0 0
  %338 = vmatpush1.bf16.msra.mxu0 0
  %339 = vmatprep.subr.bf16.mxu0 0
  %340 = vmatpush1.bf16.msra.mxu0 0
  %341 = vmatprep.subr.bf16.mxu0 0
  %342 = vmatpush1.bf16.msra.mxu0 0
  %343 = vmatprep.subr.bf16.mxu0 0
  %344 = vmatpush1.bf16.msra.mxu0 0
  %345 = vmatprep.subr.bf16.mxu0 0
  %346 = vmatpush1.bf16.msra.mxu0 0
  %347 = vmatprep.mubr.bf16.mxu0 0
  %348 = vmatmul.mubr.bf16.gmra.mrb[0].mxu0 %v314
  %v349 = vpop.f32.mrb[0].mxu0
  %v350 = vadd.f32 0.0, %v349
  %v351 = vpop.f32.mrb[0].mxu0
  %v352 = vadd.f32 0.0, %v351
  %v353 = vpop.f32.mrb[0].mxu0
  %v354 = vpop.f32.mrb[0].mxu0
  %355 = vdwg.mxu0
  %v356 = vadd.f32 %v312, %v350
  %v357 = vadd.f32 %v313, %v352
  %v358 = vmul.f32 %v356, %v141
  %v359 = vmul.f32 %v357, %v142
  %v360 = vtanh.pop %v358
  %v361 = vtanh.pop %v359
  %v362 = vmul.f32 %v360, %v141
  %v363 = vmul.f32 %v361, %v142
  %v364 = vadd.f32 %v362, %v143
  %v365 = vadd.f32 %v363, %v144
  %366 = vrot.lane.b32.xlu0 %v364, 64
  %v367 = vpop.permute.xlu0 %366
  %368 = vrot.lane.b32.xlu0 %v365, 64
  %v369 = vpop.permute.xlu0 %368
  %v370 = vmul.f32 %v364, %v367
  %v371 = vsel %vm145, %v365, %v369
  %v372 = vsel %vm145, %v369, %v365
  %v373 = vmul.f32 %v371, %v309
  %v374 = vadd.f32 %v373, %v370
  %v375 = vtanh.pop %v374
  %v376 = vmul.f32 %v372, %v375
  %v377 = vld [vmem:[#allocation2 + $0x30] sm:$0xff]
  %v378 = vld [vmem:[#allocation2 + $0x38] sm:$0xff]
  %v379 = vpack.c.bf16 %v376, %v376
  %380 = vmatprep.subr.bf16.mxu0 %v219
  %381 = vmatpush1.bf16.msra.mxu0 %v218
  %382 = vmatprep.subr.bf16.mxu0 %v221
  %383 = vmatpush1.bf16.msra.mxu0 %v220
  %384 = vmatprep.subr.bf16.mxu0 %v223
  %385 = vmatpush1.bf16.msra.mxu0 %v222
  %386 = vmatprep.subr.bf16.mxu0 %v225
  %387 = vmatpush1.bf16.msra.mxu0 %v224
  %388 = vmatprep.subr.bf16.mxu0 %v227
  %389 = vmatpush1.bf16.msra.mxu0 %v226
  %390 = vmatprep.subr.bf16.mxu0 %v229
  %391 = vmatpush1.bf16.msra.mxu0 %v228
  %392 = vmatprep.subr.bf16.mxu0 %v231
  %393 = vmatpush1.bf16.msra.mxu0 %v230
  %394 = vmatprep.subr.bf16.mxu0 %v233
  %395 = vmatpush1.bf16.msra.mxu0 %v232
  %396 = vmatprep.subr.bf16.mxu0 0
  %397 = vmatpush1.bf16.msra.mxu0 0
  %398 = vmatprep.subr.bf16.mxu0 0
  %399 = vmatpush1.bf16.msra.mxu0 0
  %400 = vmatprep.subr.bf16.mxu0 0
  %401 = vmatpush1.bf16.msra.mxu0 0
  %402 = vmatprep.subr.bf16.mxu0 0
  %403 = vmatpush1.bf16.msra.mxu0 0
  %404 = vmatprep.subr.bf16.mxu0 0
  %405 = vmatpush1.bf16.msra.mxu0 0
  %406 = vmatprep.subr.bf16.mxu0 0
  %407 = vmatpush1.bf16.msra.mxu0 0
  %408 = vmatprep.subr.bf16.mxu0 0
  %409 = vmatpush1.bf16.msra.mxu0 0
  %410 = vmatprep.subr.bf16.mxu0 0
  %411 = vmatpush1.bf16.msra.mxu0 0
  %412 = vmatprep.mubr.bf16.mxu0 0
  %413 = vmatmul.mubr.bf16.gmra.mrb[0].mxu0 %v379
  %v414 = vpop.f32.mrb[0].mxu0
  %v415 = vadd.f32 0.0, %v414
  %v416 = vpop.f32.mrb[0].mxu0
  %v417 = vadd.f32 0.0, %v416
  %v418 = vpop.f32.mrb[0].mxu0
  %v419 = vpop.f32.mrb[0].mxu0
  %420 = vdwg.mxu0
  %v421 = vadd.f32 %v377, %v415
  %v422 = vadd.f32 %v378, %v417
  %v423 = vmul.f32 %v421, %v141
  %v424 = vmul.f32 %v422, %v142
  %v425 = vtanh.pop %v423
  %v426 = vtanh.pop %v424
  %v427 = vmul.f32 %v425, %v141
  %v428 = vmul.f32 %v426, %v142
  %v429 = vadd.f32 %v427, %v143
  %v430 = vadd.f32 %v428, %v144
  %431 = vrot.lane.b32.xlu0 %v429, 64
  %v432 = vpop.permute.xlu0 %431
  %433 = vrot.lane.b32.xlu0 %v430, 64
  %v434 = vpop.permute.xlu0 %433
  %v435 = vmul.f32 %v429, %v432
  %v436 = vsel %vm145, %v430, %v434
  %v437 = vsel %vm145, %v434, %v430
  %v438 = vmul.f32 %v436, %v374
  %v439 = vadd.f32 %v438, %v435
  %v440 = vtanh.pop %v439
  %v441 = vmul.f32 %v437, %v440
  %v442 = vld [vmem:[#allocation2 + $0x40] sm:$0xff]
  %v443 = vld [vmem:[#allocation2 + $0x48] sm:$0xff]
  %v444 = vpack.c.bf16 %v441, %v441
  %445 = vmatprep.subr.bf16.mxu0 %v219
  %446 = vmatpush1.bf16.msra.mxu0 %v218
  %447 = vmatprep.subr.bf16.mxu0 %v221
  %448 = vmatpush1.bf16.msra.mxu0 %v220
  %449 = vmatprep.subr.bf16.mxu0 %v223
  %450 = vmatpush1.bf16.msra.mxu0 %v222
  %451 = vmatprep.subr.bf16.mxu0 %v225
  %452 = vmatpush1.bf16.msra.mxu0 %v224
  %453 = vmatprep.subr.bf16.mxu0 %v227
  %454 = vmatpush1.bf16.msra.mxu0 %v226
  %455 = vmatprep.subr.bf16.mxu0 %v229
  %456 = vmatpush1.bf16.msra.mxu0 %v228
  %457 = vmatprep.subr.bf16.mxu0 %v231
  %458 = vmatpush1.bf16.msra.mxu0 %v230
  %459 = vmatprep.subr.bf16.mxu0 %v233
  %460 = vmatpush1.bf16.msra.mxu0 %v232
  %461 = vmatprep.subr.bf16.mxu0 0
  %462 = vmatpush1.bf16.msra.mxu0 0
  %463 = vmatprep.subr.bf16.mxu0 0
  %464 = vmatpush1.bf16.msra.mxu0 0
  %465 = vmatprep.subr.bf16.mxu0 0
  %466 = vmatpush1.bf16.msra.mxu0 0
  %467 = vmatprep.subr.bf16.mxu0 0
  %468 = vmatpush1.bf16.msra.mxu0 0
  %469 = vmatprep.subr.bf16.mxu0 0
  %470 = vmatpush1.bf16.msra.mxu0 0
  %471 = vmatprep.subr.bf16.mxu0 0
  %472 = vmatpush1.bf16.msra.mxu0 0
  %473 = vmatprep.subr.bf16.mxu0 0
  %474 = vmatpush1.bf16.msra.mxu0 0
  %475 = vmatprep.subr.bf16.mxu0 0
  %476 = vmatpush1.bf16.msra.mxu0 0
  %477 = vmatprep.mubr.bf16.mxu0 0
  %478 = vmatmul.mubr.bf16.gmra.mrb[0].mxu0 %v444
  %v479 = vpop.f32.mrb[0].mxu0
  %v480 = vadd.f32 0.0, %v479
  %v481 = vpop.f32.mrb[0].mxu0
  %v482 = vadd.f32 0.0, %v481
  %v483 = vpop.f32.mrb[0].mxu0
  %v484 = vpop.f32.mrb[0].mxu0
  %485 = vdwg.mxu0
  %v486 = vadd.f32 %v442, %v480
  %v487 = vadd.f32 %v443, %v482
  %v488 = vmul.f32 %v486, %v141
  %v489 = vmul.f32 %v487, %v142
  %v490 = vtanh.pop %v488
  %v491 = vtanh.pop %v489
  %v492 = vmul.f32 %v490, %v141
  %v493 = vmul.f32 %v491, %v142
  %v494 = vadd.f32 %v492, %v143
  %v495 = vadd.f32 %v493, %v144
  %496 = vrot.lane.b32.xlu0 %v494, 64
  %v497 = vpop.permute.xlu0 %496
  %498 = vrot.lane.b32.xlu0 %v495, 64
  %v499 = vpop.permute.xlu0 %498
  %v500 = vmul.f32 %v494, %v497
  %v501 = vsel %vm145, %v495, %v499
  %v502 = vsel %vm145, %v499, %v495
  %v503 = vmul.f32 %v501, %v439
  %v504 = vadd.f32 %v503, %v500
  %v505 = vtanh.pop %v504
  %v506 = vmul.f32 %v502, %v505
  %v507 = vld [vmem:[%s0 + $0x28] sm:$0xff]
  %v508 = vpack.c.bf16 %v507, %v507
  %v509 = vld [vmem:[%s2] sm:$0xf]
  %v510 = vld [vmem:[%s2 + $0x4] sm:$0xf]
  %v511 = vld [vmem:[%s2 + $0x8] sm:$0xf]
  %v512 = vld [vmem:[%s2 + $0xc] sm:$0xf]
  %v513 = vld [vmem:[%s2 + $0x10] sm:$0xf]
  %v514 = vld [vmem:[%s2 + $0x14] sm:$0xf]
  %v515 = vld [vmem:[%s2 + $0x18] sm:$0xf]
  %v516 = vld [vmem:[%s2 + $0x1c] sm:$0xf]
  %v517 = vld [vmem:[%s2 + $0x20] sm:$0xf]
  %v518 = vld [vmem:[%s2 + $0x24] sm:$0xf]
  %v519 = vld [vmem:[%s2 + $0x28] sm:$0xf]
  %v520 = vld [vmem:[%s2 + $0x2c] sm:$0xf]
  %v521 = vld [vmem:[%s2 + $0x30] sm:$0xf]
  %v522 = vld [vmem:[%s2 + $0x34] sm:$0xf]
  %v523 = vld [vmem:[%s2 + $0x38] sm:$0xf]
  %v524 = vld [vmem:[%s2 + $0x3c] sm:$0xf]
  %v525 = vld [vmem:[%s2 + $0x40] sm:$0xf]
  %v526 = vld [vmem:[%s2 + $0x44] sm:$0xf]
  %v527 = vpack.c.bf16 %v506, %v506
  %v530 = vunpack.c.l.b16 %v525
  %v531 = vunpack.c.l.b16 %v526
  %v532 = vpack.c.b16 %v531, %v530
  %v535 = vsel %vm35, %v508, 0
  %537 = vmatprep.subr.bf16.mxu0 0
  %538 = vmatpush1.bf16.msra.mxu0 %v532
  %539 = vmatprep.subr.bf16.mxu0 0
  %540 = vmatpush1.bf16.msra.mxu0 0
  %541 = vmatprep.subr.bf16.mxu0 0
  %542 = vmatpush1.bf16.msra.mxu0 0
  %543 = vmatprep.subr.bf16.mxu0 0
  %544 = vmatpush1.bf16.msra.mxu0 0
  %545 = vmatprep.subr.bf16.mxu0 0
  %546 = vmatpush1.bf16.msra.mxu0 0
  %547 = vmatprep.subr.bf16.mxu0 0
  %548 = vmatpush1.bf16.msra.mxu0 0
  %549 = vmatprep.subr.bf16.mxu0 0
  %550 = vmatpush1.bf16.msra.mxu0 0
  %551 = vmatprep.subr.bf16.mxu0 0
  %552 = vmatpush1.bf16.msra.mxu0 0
  %553 = vmatprep.subr.bf16.mxu0 0
  %554 = vmatpush1.bf16.msra.mxu0 0
  %555 = vmatprep.subr.bf16.mxu0 0
  %556 = vmatpush1.bf16.msra.mxu0 0
  %557 = vmatprep.subr.bf16.mxu0 0
  %558 = vmatpush1.bf16.msra.mxu0 0
  %559 = vmatprep.subr.bf16.mxu0 0
  %560 = vmatpush1.bf16.msra.mxu0 0
  %561 = vmatprep.subr.bf16.mxu0 0
  %562 = vmatpush1.bf16.msra.mxu0 0
  %563 = vmatprep.subr.bf16.mxu0 0
  %564 = vmatpush1.bf16.msra.mxu0 0
  %565 = vmatprep.subr.bf16.mxu0 0
  %566 = vmatpush1.bf16.msra.mxu0 0
  %567 = vmatprep.subr.bf16.mxu0 0
  %568 = vmatpush1.bf16.msra.mxu0 0
  %569 = vmatprep.mubr.bf16.mxu0 0
  %570 = vmatmul.mubr.bf16.gmra.mrb[0].mxu0 %v535
  %v571 = vpop.f32.mrb[0].mxu0
  %v572 = vadd.f32 0.0, %v571
  %v573 = vpop.f32.mrb[0].mxu0
  %v574 = vpop.f32.mrb[0].mxu0
  %v575 = vpop.f32.mrb[0].mxu0
  %576 = vdwg.mxu0
  %v593 = vunpack.c.l.b16 %v509
  %v594 = vunpack.c.l.b16 %v510
  %v595 = vunpack.c.l.b16 %v511
  %v596 = vunpack.c.l.b16 %v512
  %v597 = vunpack.c.l.b16 %v513
  %v598 = vunpack.c.l.b16 %v514
  %v599 = vunpack.c.l.b16 %v515
  %v600 = vunpack.c.l.b16 %v516
  %v601 = vunpack.c.l.b16 %v517
  %v602 = vunpack.c.l.b16 %v518
  %v603 = vunpack.c.l.b16 %v519
  %v604 = vunpack.c.l.b16 %v520
  %v605 = vunpack.c.l.b16 %v521
  %v606 = vunpack.c.l.b16 %v522
  %v607 = vunpack.c.l.b16 %v523
  %v608 = vunpack.c.l.b16 %v524
  %v609 = vpack.c.b16 %v594, %v593
  %v610 = vpack.c.b16 %v596, %v595
  %v611 = vpack.c.b16 %v598, %v597
  %v612 = vpack.c.b16 %v600, %v599
  %v613 = vpack.c.b16 %v602, %v601
  %v614 = vpack.c.b16 %v604, %v603
  %v615 = vpack.c.b16 %v606, %v605
  %v616 = vpack.c.b16 %v608, %v607
  %625 = vmatprep.subr.bf16.mxu0 0
  %626 = vmatpush1.bf16.msra.mxu0 %v609
  %627 = vmatprep.subr.bf16.mxu0 0
  %628 = vmatpush1.bf16.msra.mxu0 %v610
  %629 = vmatprep.subr.bf16.mxu0 0
  %630 = vmatpush1.bf16.msra.mxu0 %v611
  %631 = vmatprep.subr.bf16.mxu0 0
  %632 = vmatpush1.bf16.msra.mxu0 %v612
  %633 = vmatprep.subr.bf16.mxu0 0
  %634 = vmatpush1.bf16.msra.mxu0 %v613
  %635 = vmatprep.subr.bf16.mxu0 0
  %636 = vmatpush1.bf16.msra.mxu0 %v614
  %637 = vmatprep.subr.bf16.mxu0 0
  %638 = vmatpush1.bf16.msra.mxu0 %v615
  %639 = vmatprep.subr.bf16.mxu0 0
  %640 = vmatpush1.bf16.msra.mxu0 %v616
  %641 = vmatprep.subr.bf16.mxu0 0
  %642 = vmatpush1.bf16.msra.mxu0 0
  %643 = vmatprep.subr.bf16.mxu0 0
  %644 = vmatpush1.bf16.msra.mxu0 0
  %645 = vmatprep.subr.bf16.mxu0 0
  %646 = vmatpush1.bf16.msra.mxu0 0
  %647 = vmatprep.subr.bf16.mxu0 0
  %648 = vmatpush1.bf16.msra.mxu0 0
  %649 = vmatprep.subr.bf16.mxu0 0
  %650 = vmatpush1.bf16.msra.mxu0 0
  %651 = vmatprep.subr.bf16.mxu0 0
  %652 = vmatpush1.bf16.msra.mxu0 0
  %653 = vmatprep.subr.bf16.mxu0 0
  %654 = vmatpush1.bf16.msra.mxu0 0
  %655 = vmatprep.subr.bf16.mxu0 0
  %656 = vmatpush1.bf16.msra.mxu0 0
  %657 = vmatprep.mubr.bf16.mxu0 0
  %658 = vmatmul.mubr.bf16.gmra.mrb[0].mxu0 %v527
  %v659 = vpop.f32.mrb[0].mxu0
  %v660 = vadd.f32 %v572, %v659
  %v661 = vpop.f32.mrb[0].mxu0
  %v662 = vpop.f32.mrb[0].mxu0
  %v663 = vpop.f32.mrb[0].mxu0
  %664 = vdwg.mxu0
  %vm665 = vcmask 48128
  %666 = vst.msk [vmem:[%s3] sm:$0xff] %vm665, %v660
  // Predicated region
  $region14: #{lstm_forward.1} parent=0 // pred_check
    _
  $region15: #{lstm_forward.1} parent=0 // pred_check_branch
    %668 = sbr.rel (0) target = $region17
  $region16: #{lstm_forward.1} parent=0 // pred_region
    _
  $region17: #{lstm_forward.1} parent=0 // pred_fallthru
    _
  // Predicated region
  $region18: #{lstm_forward.1} parent=0 // pred_check
    _
  $region19: #{lstm_forward.1} parent=0 // pred_check_branch
    %670 = sbr.rel (0) target = $region21
  $region20: #{lstm_forward.1} parent=0 // pred_region
    _
  $region21: #{lstm_forward.1} parent=0 // pred_fallthru
    _

</llo_original>
